<compile_context>
chip_gen: v5e
topology: v5e:2x2
jax: 0.10.0
libtpu: 0.0.40
codegen_flags: <defaults>
</compile_context>

<pallas_src>
import jax
import jax.numpy as jnp
from jax import lax
from jax.experimental import pallas as pl
from jax.experimental.pallas import tpu as pltpu


def _round_up(n, m):
    return ((n + m - 1) // m) * m


def _rnn_kernel(x_ref, whx_ref, bh_ref, whh_ref, wch_ref, wcx_ref, bc_ref,
                out_ref, xh_buf, h_state):
    # x_ref:   (tT, bb, I)    time-major chunk, compute dtype (bf16)
    # whx_ref: (I, Hp)        compute dtype
    # bh_ref:  (1, Hp)        f32
    # whh_ref: (Hp, Hp)       compute dtype
    # wch_ref: (Hp, Cw)       compute dtype, Wch placed at cols [H, H+O)
    # wcx_ref: (I, Cw)        compute dtype, Wcx placed at cols [H, H+O)
    # bc_ref:  (1, Cw)        f32, bc placed at cols [H, H+O)
    # out_ref: (tT, bb, Cw)   f32 packed output: lanes [0,H)=h, [H,H+O)=c
    # xh_buf:  (tT, bb, Hp)   f32 VMEM scratch for the hoisted x-projection
    # h_state: (bb, Hp)       f32 persistent recurrent state (scratch)
    tT, bb, I = x_ref.shape
    Hp = whh_ref.shape[0]
    Cw = out_ref.shape[-1]

    @pl.when(pl.program_id(1) == 0)
    def _():
        h_state[...] = jnp.zeros_like(h_state)

    # --- Hoisted input projection (bias folded), staged in VMEM so nothing wide
    #     stays live across the serial loop.
    x2 = x_ref[...].reshape(tT * bb, I)
    xh = (jnp.dot(x2, whx_ref[...], preferred_element_type=jnp.float32)
          + bh_ref[...])                                   # (tT*bb, Hp) f32
    xh_buf[...] = xh.reshape(tT, bb, Hp)

    # --- Serial recurrence: per step only the dependent matmul + tanh.
    whh = whh_ref[...]                                      # (Hp, Hp) bf16, ~8 vregs
    # TODO(synk): on v5e, hold Whh weight-stationary via pltpu.matmul_push_rhs /
    # matmul_acc_lhs / matmul_pop so each step only pushes bb LHS rows.

    def step(t, h_prev):
        pre = xh_buf[t] + jnp.dot(h_prev.astype(whh.dtype), whh,
                                  preferred_element_type=jnp.float32)
        h_t = jnp.tanh(pre)                                 # f32 tanh (EUP)
        out_ref[t] = h_t                                    # full 128-lane store
        return h_t

    h_last = lax.fori_loop(0, tT, step, h_state[...], unroll=min(8, tT))
    h_state[...] = h_last

    # --- Deferred, fused c projection packed into lanes [H, H+O) of the slab.
    #     Padded h lanes are exactly 0 (zero-padded weights/bias, tanh(0)=0) and
    #     the c weights are zero outside [H, H+O), so a single add merges them.
    h_all = out_ref[...]                                    # (tT, bb, Cw) f32
    x2b = x_ref[...].reshape(tT * bb, I)                    # re-read (VMEM, cheap)
    c = (jnp.dot(h_all.reshape(tT * bb, Cw).astype(wch_ref.dtype), wch_ref[...],
                 preferred_element_type=jnp.float32)
         + jnp.dot(x2b, wcx_ref[...], preferred_element_type=jnp.float32)
         + bc_ref[...])                                     # nonzero only in [H,H+O)
    out_ref[...] = h_all + c.reshape(tT, bb, Cw)


def rnn_forward(x, Whx, Whh, bh, Wcx, Wch, bc, *,
                block_t=128, compute_dtype=jnp.bfloat16):
    """x: (B, T, input_size) f32 -> (c_out (B, T, O), h_out (B, T, H))."""
    B, T, I = x.shape
    H = Whh.shape[0]
    O = Wch.shape[1]
    Cw = 128                              # packed-output lane width
    if H + O > Cw:
        raise ValueError("packed-output layout needs hidden + output <= 128")
    Hp = _round_up(H, 128)                # == Cw given the check above

    bb = min(_round_up(B, 8), 128)        # batch rows per grid block (sublane-aligned)
    Bp = _round_up(B, bb)
    nb = Bp // bb
    tT = min(block_t, T)                  # T-chunk length
    Tp = _round_up(T, tT)
    nt = Tp // tT

    # Time-major, padded, cast to the MXU operand dtype (halves x HBM traffic).
    x_tm = jnp.transpose(x, (1, 0, 2))                                  # (T, B, I)
    x_tm = jnp.pad(x_tm, ((0, Tp - T), (0, Bp - B), (0, 0))).astype(compute_dtype)

    # Recurrent-path weights (zero-padded -> padded h lanes stay exactly 0).
    Whx_p = jnp.pad(Whx, ((0, 0), (0, Hp - H))).astype(compute_dtype)   # (I, Hp)
    bh_p = jnp.pad(bh, (0, Hp - H)).reshape(1, Hp).astype(jnp.float32)  # (1, Hp)
    Whh_p = jnp.pad(Whh, ((0, Hp - H), (0, Hp - H))).astype(compute_dtype)

    # c-projection weights with output columns placed at [H, H+O) of the packed slab.
    Wch_p = jnp.pad(Wch, ((0, Hp - H), (H, Cw - H - O))).astype(compute_dtype)
    Wcx_p = jnp.pad(Wcx, ((0, 0), (H, Cw - H - O))).astype(compute_dtype)
    bc_p = jnp.pad(bc, (H, Cw - H - O)).reshape(1, Cw).astype(jnp.float32)

    # VMEM budget: double-buffered x/out blocks + scratches + weights (+ margin).
    csize = jnp.dtype(compute_dtype).itemsize
    est = (2 * tT * bb * I * csize                 # x blocks
           + 2 * tT * bb * Cw * 4                  # packed output blocks
           + tT * bb * Hp * 4                      # xh scratch
           + bb * Hp * 4                           # h_state
           + 2 * (I * Hp + Hp * Hp + Hp * Cw + I * Cw) * csize
           + 2 * (Hp + Cw) * 4)
    vmem_limit = int(max(est + (4 << 20), 12 << 20))   # a few MiB at defaults (v7x-safe)

    out_tm = pl.pallas_call(
        _rnn_kernel,
        out_shape=jax.ShapeDtypeStruct((Tp, Bp, Cw), jnp.float32),
        grid_spec=pltpu.PrefetchScalarGridSpec(
            num_scalar_prefetch=0,
            grid=(nb, nt),
            in_specs=[
                pl.BlockSpec((tT, bb, I), lambda b, t: (t, b, 0)),   # x chunk
                pl.BlockSpec((I, Hp), lambda b, t: (0, 0)),          # Whx
                pl.BlockSpec((1, Hp), lambda b, t: (0, 0)),          # bh
                pl.BlockSpec((Hp, Hp), lambda b, t: (0, 0)),         # Whh
                pl.BlockSpec((Hp, Cw), lambda b, t: (0, 0)),         # Wch (placed)
                pl.BlockSpec((I, Cw), lambda b, t: (0, 0)),          # Wcx (placed)
                pl.BlockSpec((1, Cw), lambda b, t: (0, 0)),          # bc  (placed)
            ],
            out_specs=pl.BlockSpec((tT, bb, Cw), lambda b, t: (t, b, 0)),
            scratch_shapes=[
                pltpu.VMEM((tT, bb, Hp), jnp.float32),               # xh_buf
                pltpu.VMEM((bb, Hp), jnp.float32),                   # h_state
            ],
        ),
        compiler_params=pltpu.CompilerParams(
            dimension_semantics=("parallel", "arbitrary"),   # batch parallel, T sequential
            vmem_limit_bytes=vmem_limit,
        ),
    )(x_tm, Whx_p, bh_p, Whh_p, Wch_p, Wcx_p, bc_p)

    # Slice the packed slab and return in the module's (B, T, F) layout.
    h_out = jnp.transpose(out_tm[:T, :B, :H], (1, 0, 2))
    c_out = jnp.transpose(out_tm[:T, :B, H:H + O], (1, 0, 2))
    return c_out, h_out


def rnn_forward_ref(x, Whx, Whh, bh, Wcx, Wch, bc, compute_dtype=jnp.bfloat16):
    """Pure-JAX reference with the SAME operand-dtype rounding (f32 accumulate)."""
    B, T, I = x.shape
    H = Whh.shape[0]
    x_c = x.astype(compute_dtype)
    Whx_c = Whx.astype(compute_dtype)
    Whh_c = Whh.astype(compute_dtype)
    Wcx_c = Wcx.astype(compute_dtype)
    Wch_c = Wch.astype(compute_dtype)
    h = jnp.zeros((B, H), jnp.float32)
    c_list, h_list = [], []
    for t in range(T):
        x_t = x_c[:, t, :]
        pre = (jnp.dot(x_t, Whx_c, preferred_element_type=jnp.float32)
               + jnp.dot(h.astype(compute_dtype), Whh_c,
                         preferred_element_type=jnp.float32) + bh)
        h = jnp.tanh(pre)
        c = (jnp.dot(x_t, Wcx_c, preferred_element_type=jnp.float32)
             + jnp.dot(h.astype(compute_dtype), Wch_c,
                       preferred_element_type=jnp.float32) + bc)
        c_list.append(c)
        h_list.append(h)
    return jnp.stack(c_list, axis=1), jnp.stack(h_list, axis=1)


if __name__ == "__main__":
    # Small shapes consistent with the module's forward.
    B, T = 2, 8
    input_size, hidden_size, output_size = 16, 32, 8

    key = jax.random.PRNGKey(0)
    kx, k1, k2, k3, k4 = jax.random.split(key, 5)

    x = jax.random.normal(kx, (B, T, input_size), jnp.float32)
    # Deterministic parameter init mirroring __init__ shapes (randn / zeros).
    Whx = jax.random.normal(k1, (input_size, hidden_size), jnp.float32)
    Whh = jax.random.normal(k2, (hidden_size, hidden_size), jnp.float32)
    bh = jnp.zeros((hidden_size,), jnp.float32)
    Wch = jax.random.normal(k3, (hidden_size, output_size), jnp.float32)
    Wcx = jax.random.normal(k4, (input_size, output_size), jnp.float32)
    bc = jnp.zeros((output_size,), jnp.float32)

    c_out, h_out = jax.jit(rnn_forward)(x, Whx, Whh, bh, Wcx, Wch, bc)
    jax.block_until_ready((c_out, h_out))

    # Validate against a pure-JAX reference using the same bf16 operand rounding
    # (f32 accumulation), so the comparison isolates kernel structure.
    c_ref, h_ref = rnn_forward_ref(x, Whx, Whh, bh, Wcx, Wch, bc)
    assert c_out.shape == (B, T, output_size)
    assert h_out.shape == (B, T, hidden_size)
    assert jnp.allclose(c_out, c_ref, atol=1e-3, rtol=1e-3)
    assert jnp.allclose(h_out, h_ref, atol=1e-3, rtol=1e-3)

    print("KERNEL_OK")
</pallas_src>

<mosaic_0001>
module attributes {stable_mosaic.version = 11 : i64} {
  func.func @_rnn_kernel(%arg0: i32, %arg1: i32, %arg2: memref<8x8x16xbf16, #tpu.memory_space<vmem>>, %arg3: memref<16x128xbf16, #tpu.memory_space<vmem>>, %arg4: memref<1x128xf32, #tpu.memory_space<vmem>>, %arg5: memref<128x128xbf16, #tpu.memory_space<vmem>>, %arg6: memref<128x128xbf16, #tpu.memory_space<vmem>>, %arg7: memref<16x128xbf16, #tpu.memory_space<vmem>>, %arg8: memref<1x128xf32, #tpu.memory_space<vmem>>, %arg9: memref<8x8x128xf32, #tpu.memory_space<vmem>>, %arg10: memref<8x8x128xf32, #tpu.memory_space<vmem>>, %arg11: memref<8x128xf32, #tpu.memory_space<vmem>>) attributes {dimension_semantics = [#tpu.dimension_semantics<parallel>, #tpu.dimension_semantics<arbitrary>], iteration_bounds = array<i64: 1, 1>, scalar_prefetch = 0 : i64, scratch_operands = 2 : i64, tpu.core_type = #tpu.core_type<tc>, window_params = [{transform_indices = @transform_0, window_bounds = array<i64: 8, 8, 16>}, {pipeline_mode = #tpu.pipeline_mode<synchronous>, transform_indices = @transform_1, window_bounds = array<i64: 16, 128>}, {pipeline_mode = #tpu.pipeline_mode<synchronous>, transform_indices = @transform_2, window_bounds = array<i64: 1, 128>}, {pipeline_mode = #tpu.pipeline_mode<synchronous>, transform_indices = @transform_3, window_bounds = array<i64: 128, 128>}, {pipeline_mode = #tpu.pipeline_mode<synchronous>, transform_indices = @transform_4, window_bounds = array<i64: 128, 128>}, {pipeline_mode = #tpu.pipeline_mode<synchronous>, transform_indices = @transform_5, window_bounds = array<i64: 16, 128>}, {pipeline_mode = #tpu.pipeline_mode<synchronous>, transform_indices = @transform_6, window_bounds = array<i64: 1, 128>}, {transform_indices = @transform_7, window_bounds = array<i64: 8, 8, 128>}]} {
    %c0_i32 = arith.constant 0 : i32
    %0 = arith.cmpi eq, %arg1, %c0_i32 : i32
    %1 = arith.extui %0 : i1 to i32
    %c0_i32_0 = arith.constant 0 : i32
    %2 = arith.cmpi ne, %1, %c0_i32_0 : i32
    scf.if %2 {
      %cst_74 = arith.constant 0.000000e+00 : f32
      %119 = vector.broadcast %cst_74 : f32 to vector<8x128xf32>
      %c0_75 = arith.constant 0 : index
      %c0_76 = arith.constant 0 : index
      %120 = vector.load %arg11[%c0_75, %c0_76] : memref<8x128xf32, #tpu.memory_space<vmem>>, vector<8x128xf32>
      tpu.vector_store %arg11[%c0_75, %c0_76], %119 {strides = array<i32>} : memref<8x128xf32, #tpu.memory_space<vmem>>, vector<8x128xf32>,
    } else {
    }
    %c0 = arith.constant 0 : index
    %c0_1 = arith.constant 0 : index
    %c0_2 = arith.constant 0 : index
    %3 = vector.load %arg2[%c0, %c0_1, %c0_2] : memref<8x8x16xbf16, #tpu.memory_space<vmem>>, vector<8x8x16xbf16>
    %4 = vector.shape_cast %3 : vector<8x8x16xbf16> to vector<64x16xbf16>
    %c0_3 = arith.constant 0 : index
    %c0_4 = arith.constant 0 : index
    %5 = vector.load %arg3[%c0_3, %c0_4] : memref<16x128xbf16, #tpu.memory_space<vmem>>, vector<16x128xbf16>
    %cst = arith.constant dense<0.000000e+00> : vector<64x128xf32>
    %6 = tpu.matmul %4, %5, %cst {dimension_numbers = #tpu.dot_dimension_numbers<[1], [0], [0], [1], [0, 0, 1, 1], [], []>} : vector<64x16xbf16>, vector<16x128xbf16>, vector<64x128xf32> -> vector<64x128xf32>
    %c0_5 = arith.constant 0 : index
    %c0_6 = arith.constant 0 : index
    %7 = vector.load %arg4[%c0_5, %c0_6] : memref<1x128xf32, #tpu.memory_space<vmem>>, vector<1x128xf32>
    %8 = vector.broadcast %7 : vector<1x128xf32> to vector<64x128xf32>
    %9 = arith.addf %6, %8 : vector<64x128xf32>
    %10 = vector.shape_cast %9 : vector<64x128xf32> to vector<8x8x128xf32>
    %c0_7 = arith.constant 0 : index
    %c0_8 = arith.constant 0 : index
    %c0_9 = arith.constant 0 : index
    %11 = vector.load %arg10[%c0_7, %c0_8, %c0_9] : memref<8x8x128xf32, #tpu.memory_space<vmem>>, vector<8x8x128xf32>
    tpu.vector_store %arg10[%c0_7, %c0_8, %c0_9], %10 {strides = array<i32>} : memref<8x8x128xf32, #tpu.memory_space<vmem>>, vector<8x8x128xf32>,
    %c0_10 = arith.constant 0 : index
    %c0_11 = arith.constant 0 : index
    %12 = vector.load %arg5[%c0_10, %c0_11] : memref<128x128xbf16, #tpu.memory_space<vmem>>, vector<128x128xbf16>
    %c0_12 = arith.constant 0 : index
    %c0_13 = arith.constant 0 : index
    %13 = vector.load %arg11[%c0_12, %c0_13] : memref<8x128xf32, #tpu.memory_space<vmem>>, vector<8x128xf32>
    %c0_i32_14 = arith.constant 0 : i32
    %14 = arith.index_cast %c0_i32_14 : i32 to index
    %c0_15 = arith.constant 0 : index
    %c0_16 = arith.constant 0 : index
    %15 = vector.load %arg10[%14, %c0_15, %c0_16] : memref<8x8x128xf32, #tpu.memory_space<vmem>>, vector<1x8x128xf32>
    %16 = vector.shape_cast %15 : vector<1x8x128xf32> to vector<8x128xf32>
    %17 = arith.truncf %13 : vector<8x128xf32> to vector<8x128xbf16>
    %cst_17 = arith.constant dense<0.000000e+00> : vector<8x128xf32>
    %18 = tpu.matmul %17, %12, %cst_17 {dimension_numbers = #tpu.dot_dimension_numbers<[1], [0], [0], [1], [0, 0, 1, 1], [], []>} : vector<8x128xbf16>, vector<128x128xbf16>, vector<8x128xf32> -> vector<8x128xf32>
    %19 = arith.addf %16, %18 : vector<8x128xf32>
    %20 = math.tanh %19 : vector<8x128xf32>
    %21 = arith.index_cast %c0_i32_14 : i32 to index
    %c0_18 = arith.constant 0 : index
    %c0_19 = arith.constant 0 : index
    %22 = vector.load %arg9[%21, %c0_18, %c0_19] : memref<8x8x128xf32, #tpu.memory_space<vmem>>, vector<1x8x128xf32>
    %23 = vector.shape_cast %22 : vector<1x8x128xf32> to vector<8x128xf32>
    %24 = vector.shape_cast %20 : vector<8x128xf32> to vector<1x8x128xf32>
    tpu.vector_store %arg9[%21, %c0_18, %c0_19], %24 {strides = array<i32>} : memref<8x8x128xf32, #tpu.memory_space<vmem>>, vector<1x8x128xf32>,
    %c1_i32 = arith.constant 1 : i32
    %25 = arith.index_cast %c1_i32 : i32 to index
    %c0_20 = arith.constant 0 : index
    %c0_21 = arith.constant 0 : index
    %26 = vector.load %arg10[%25, %c0_20, %c0_21] : memref<8x8x128xf32, #tpu.memory_space<vmem>>, vector<1x8x128xf32>
    %27 = vector.shape_cast %26 : vector<1x8x128xf32> to vector<8x128xf32>
    %28 = arith.truncf %20 : vector<8x128xf32> to vector<8x128xbf16>
    %cst_22 = arith.constant dense<0.000000e+00> : vector<8x128xf32>
    %29 = tpu.matmul %28, %12, %cst_22 {dimension_numbers = #tpu.dot_dimension_numbers<[1], [0], [0], [1], [0, 0, 1, 1], [], []>} : vector<8x128xbf16>, vector<128x128xbf16>, vector<8x128xf32> -> vector<8x128xf32>
    %30 = arith.addf %27, %29 : vector<8x128xf32>
    %31 = math.tanh %30 : vector<8x128xf32>
    %32 = arith.index_cast %c1_i32 : i32 to index
    %c0_23 = arith.constant 0 : index
    %c0_24 = arith.constant 0 : index
    %33 = vector.load %arg9[%32, %c0_23, %c0_24] : memref<8x8x128xf32, #tpu.memory_space<vmem>>, vector<1x8x128xf32>
    %34 = vector.shape_cast %33 : vector<1x8x128xf32> to vector<8x128xf32>
    %35 = vector.shape_cast %31 : vector<8x128xf32> to vector<1x8x128xf32>
    tpu.vector_store %arg9[%32, %c0_23, %c0_24], %35 {strides = array<i32>} : memref<8x8x128xf32, #tpu.memory_space<vmem>>, vector<1x8x128xf32>,
    %c2_i32 = arith.constant 2 : i32
    %36 = arith.index_cast %c2_i32 : i32 to index
    %c0_25 = arith.constant 0 : index
    %c0_26 = arith.constant 0 : index
    %37 = vector.load %arg10[%36, %c0_25, %c0_26] : memref<8x8x128xf32, #tpu.memory_space<vmem>>, vector<1x8x128xf32>
    %38 = vector.shape_cast %37 : vector<1x8x128xf32> to vector<8x128xf32>
    %39 = arith.truncf %31 : vector<8x128xf32> to vector<8x128xbf16>
    %cst_27 = arith.constant dense<0.000000e+00> : vector<8x128xf32>
    %40 = tpu.matmul %39, %12, %cst_27 {dimension_numbers = #tpu.dot_dimension_numbers<[1], [0], [0], [1], [0, 0, 1, 1], [], []>} : vector<8x128xbf16>, vector<128x128xbf16>, vector<8x128xf32> -> vector<8x128xf32>
    %41 = arith.addf %38, %40 : vector<8x128xf32>
    %42 = math.tanh %41 : vector<8x128xf32>
    %43 = arith.index_cast %c2_i32 : i32 to index
    %c0_28 = arith.constant 0 : index
    %c0_29 = arith.constant 0 : index
    %44 = vector.load %arg9[%43, %c0_28, %c0_29] : memref<8x8x128xf32, #tpu.memory_space<vmem>>, vector<1x8x128xf32>
    %45 = vector.shape_cast %44 : vector<1x8x128xf32> to vector<8x128xf32>
    %46 = vector.shape_cast %42 : vector<8x128xf32> to vector<1x8x128xf32>
    tpu.vector_store %arg9[%43, %c0_28, %c0_29], %46 {strides = array<i32>} : memref<8x8x128xf32, #tpu.memory_space<vmem>>, vector<1x8x128xf32>,
    %c3_i32 = arith.constant 3 : i32
    %47 = arith.index_cast %c3_i32 : i32 to index
    %c0_30 = arith.constant 0 : index
    %c0_31 = arith.constant 0 : index
    %48 = vector.load %arg10[%47, %c0_30, %c0_31] : memref<8x8x128xf32, #tpu.memory_space<vmem>>, vector<1x8x128xf32>
    %49 = vector.shape_cast %48 : vector<1x8x128xf32> to vector<8x128xf32>
    %50 = arith.truncf %42 : vector<8x128xf32> to vector<8x128xbf16>
    %cst_32 = arith.constant dense<0.000000e+00> : vector<8x128xf32>
    %51 = tpu.matmul %50, %12, %cst_32 {dimension_numbers = #tpu.dot_dimension_numbers<[1], [0], [0], [1], [0, 0, 1, 1], [], []>} : vector<8x128xbf16>, vector<128x128xbf16>, vector<8x128xf32> -> vector<8x128xf32>
    %52 = arith.addf %49, %51 : vector<8x128xf32>
    %53 = math.tanh %52 : vector<8x128xf32>
    %54 = arith.index_cast %c3_i32 : i32 to index
    %c0_33 = arith.constant 0 : index
    %c0_34 = arith.constant 0 : index
    %55 = vector.load %arg9[%54, %c0_33, %c0_34] : memref<8x8x128xf32, #tpu.memory_space<vmem>>, vector<1x8x128xf32>
    %56 = vector.shape_cast %55 : vector<1x8x128xf32> to vector<8x128xf32>
    %57 = vector.shape_cast %53 : vector<8x128xf32> to vector<1x8x128xf32>
    tpu.vector_store %arg9[%54, %c0_33, %c0_34], %57 {strides = array<i32>} : memref<8x8x128xf32, #tpu.memory_space<vmem>>, vector<1x8x128xf32>,
    %c4_i32 = arith.constant 4 : i32
    %58 = arith.index_cast %c4_i32 : i32 to index
    %c0_35 = arith.constant 0 : index
    %c0_36 = arith.constant 0 : index
    %59 = vector.load %arg10[%58, %c0_35, %c0_36] : memref<8x8x128xf32, #tpu.memory_space<vmem>>, vector<1x8x128xf32>
    %60 = vector.shape_cast %59 : vector<1x8x128xf32> to vector<8x128xf32>
    %61 = arith.truncf %53 : vector<8x128xf32> to vector<8x128xbf16>
    %cst_37 = arith.constant dense<0.000000e+00> : vector<8x128xf32>
    %62 = tpu.matmul %61, %12, %cst_37 {dimension_numbers = #tpu.dot_dimension_numbers<[1], [0], [0], [1], [0, 0, 1, 1], [], []>} : vector<8x128xbf16>, vector<128x128xbf16>, vector<8x128xf32> -> vector<8x128xf32>
    %63 = arith.addf %60, %62 : vector<8x128xf32>
    %64 = math.tanh %63 : vector<8x128xf32>
    %65 = arith.index_cast %c4_i32 : i32 to index
    %c0_38 = arith.constant 0 : index
    %c0_39 = arith.constant 0 : index
    %66 = vector.load %arg9[%65, %c0_38, %c0_39] : memref<8x8x128xf32, #tpu.memory_space<vmem>>, vector<1x8x128xf32>
    %67 = vector.shape_cast %66 : vector<1x8x128xf32> to vector<8x128xf32>
    %68 = vector.shape_cast %64 : vector<8x128xf32> to vector<1x8x128xf32>
    tpu.vector_store %arg9[%65, %c0_38, %c0_39], %68 {strides = array<i32>} : memref<8x8x128xf32, #tpu.memory_space<vmem>>, vector<1x8x128xf32>,
    %c5_i32 = arith.constant 5 : i32
    %69 = arith.index_cast %c5_i32 : i32 to index
    %c0_40 = arith.constant 0 : index
    %c0_41 = arith.constant 0 : index
    %70 = vector.load %arg10[%69, %c0_40, %c0_41] : memref<8x8x128xf32, #tpu.memory_space<vmem>>, vector<1x8x128xf32>
    %71 = vector.shape_cast %70 : vector<1x8x128xf32> to vector<8x128xf32>
    %72 = arith.truncf %64 : vector<8x128xf32> to vector<8x128xbf16>
    %cst_42 = arith.constant dense<0.000000e+00> : vector<8x128xf32>
    %73 = tpu.matmul %72, %12, %cst_42 {dimension_numbers = #tpu.dot_dimension_numbers<[1], [0], [0], [1], [0, 0, 1, 1], [], []>} : vector<8x128xbf16>, vector<128x128xbf16>, vector<8x128xf32> -> vector<8x128xf32>
    %74 = arith.addf %71, %73 : vector<8x128xf32>
    %75 = math.tanh %74 : vector<8x128xf32>
    %76 = arith.index_cast %c5_i32 : i32 to index
    %c0_43 = arith.constant 0 : index
    %c0_44 = arith.constant 0 : index
    %77 = vector.load %arg9[%76, %c0_43, %c0_44] : memref<8x8x128xf32, #tpu.memory_space<vmem>>, vector<1x8x128xf32>
    %78 = vector.shape_cast %77 : vector<1x8x128xf32> to vector<8x128xf32>
    %79 = vector.shape_cast %75 : vector<8x128xf32> to vector<1x8x128xf32>
    tpu.vector_store %arg9[%76, %c0_43, %c0_44], %79 {strides = array<i32>} : memref<8x8x128xf32, #tpu.memory_space<vmem>>, vector<1x8x128xf32>,
    %c6_i32 = arith.constant 6 : i32
    %80 = arith.index_cast %c6_i32 : i32 to index
    %c0_45 = arith.constant 0 : index
    %c0_46 = arith.constant 0 : index
    %81 = vector.load %arg10[%80, %c0_45, %c0_46] : memref<8x8x128xf32, #tpu.memory_space<vmem>>, vector<1x8x128xf32>
    %82 = vector.shape_cast %81 : vector<1x8x128xf32> to vector<8x128xf32>
    %83 = arith.truncf %75 : vector<8x128xf32> to vector<8x128xbf16>
    %cst_47 = arith.constant dense<0.000000e+00> : vector<8x128xf32>
    %84 = tpu.matmul %83, %12, %cst_47 {dimension_numbers = #tpu.dot_dimension_numbers<[1], [0], [0], [1], [0, 0, 1, 1], [], []>} : vector<8x128xbf16>, vector<128x128xbf16>, vector<8x128xf32> -> vector<8x128xf32>
    %85 = arith.addf %82, %84 : vector<8x128xf32>
    %86 = math.tanh %85 : vector<8x128xf32>
    %87 = arith.index_cast %c6_i32 : i32 to index
    %c0_48 = arith.constant 0 : index
    %c0_49 = arith.constant 0 : index
    %88 = vector.load %arg9[%87, %c0_48, %c0_49] : memref<8x8x128xf32, #tpu.memory_space<vmem>>, vector<1x8x128xf32>
    %89 = vector.shape_cast %88 : vector<1x8x128xf32> to vector<8x128xf32>
    %90 = vector.shape_cast %86 : vector<8x128xf32> to vector<1x8x128xf32>
    tpu.vector_store %arg9[%87, %c0_48, %c0_49], %90 {strides = array<i32>} : memref<8x8x128xf32, #tpu.memory_space<vmem>>, vector<1x8x128xf32>,
    %c7_i32 = arith.constant 7 : i32
    %91 = arith.index_cast %c7_i32 : i32 to index
    %c0_50 = arith.constant 0 : index
    %c0_51 = arith.constant 0 : index
    %92 = vector.load %arg10[%91, %c0_50, %c0_51] : memref<8x8x128xf32, #tpu.memory_space<vmem>>, vector<1x8x128xf32>
    %93 = vector.shape_cast %92 : vector<1x8x128xf32> to vector<8x128xf32>
    %94 = arith.truncf %86 : vector<8x128xf32> to vector<8x128xbf16>
    %cst_52 = arith.constant dense<0.000000e+00> : vector<8x128xf32>
    %95 = tpu.matmul %94, %12, %cst_52 {dimension_numbers = #tpu.dot_dimension_numbers<[1], [0], [0], [1], [0, 0, 1, 1], [], []>} : vector<8x128xbf16>, vector<128x128xbf16>, vector<8x128xf32> -> vector<8x128xf32>
    %96 = arith.addf %93, %95 : vector<8x128xf32>
    %97 = math.tanh %96 : vector<8x128xf32>
    %98 = arith.index_cast %c7_i32 : i32 to index
    %c0_53 = arith.constant 0 : index
    %c0_54 = arith.constant 0 : index
    %99 = vector.load %arg9[%98, %c0_53, %c0_54] : memref<8x8x128xf32, #tpu.memory_space<vmem>>, vector<1x8x128xf32>
    %100 = vector.shape_cast %99 : vector<1x8x128xf32> to vector<8x128xf32>
    %101 = vector.shape_cast %97 : vector<8x128xf32> to vector<1x8x128xf32>
    tpu.vector_store %arg9[%98, %c0_53, %c0_54], %101 {strides = array<i32>} : memref<8x8x128xf32, #tpu.memory_space<vmem>>, vector<1x8x128xf32>,
    %c8_i32 = arith.constant 8 : i32
    %c0_55 = arith.constant 0 : index
    %c0_56 = arith.constant 0 : index
    %102 = vector.load %arg11[%c0_55, %c0_56] : memref<8x128xf32, #tpu.memory_space<vmem>>, vector<8x128xf32>
    tpu.vector_store %arg11[%c0_55, %c0_56], %97 {strides = array<i32>} : memref<8x128xf32, #tpu.memory_space<vmem>>, vector<8x128xf32>,
    %c0_57 = arith.constant 0 : index
    %c0_58 = arith.constant 0 : index
    %c0_59 = arith.constant 0 : index
    %103 = vector.load %arg9[%c0_57, %c0_58, %c0_59] : memref<8x8x128xf32, #tpu.memory_space<vmem>>, vector<8x8x128xf32>
    %c0_60 = arith.constant 0 : index
    %c0_61 = arith.constant 0 : index
    %c0_62 = arith.constant 0 : index
    %104 = vector.load %arg2[%c0_60, %c0_61, %c0_62] : memref<8x8x16xbf16, #tpu.memory_space<vmem>>, vector<8x8x16xbf16>
    %105 = vector.shape_cast %104 : vector<8x8x16xbf16> to vector<64x16xbf16>
    %106 = vector.shape_cast %103 : vector<8x8x128xf32> to vector<64x128xf32>
    %107 = arith.truncf %106 : vector<64x128xf32> to vector<64x128xbf16>
    %c0_63 = arith.constant 0 : index
    %c0_64 = arith.constant 0 : index
    %108 = vector.load %arg6[%c0_63, %c0_64] : memref<128x128xbf16, #tpu.memory_space<vmem>>, vector<128x128xbf16>
    %cst_65 = arith.constant dense<0.000000e+00> : vector<64x128xf32>
    %109 = tpu.matmul %107, %108, %cst_65 {dimension_numbers = #tpu.dot_dimension_numbers<[1], [0], [0], [1], [0, 0, 1, 1], [], []>} : vector<64x128xbf16>, vector<128x128xbf16>, vector<64x128xf32> -> vector<64x128xf32>
    %c0_66 = arith.constant 0 : index
    %c0_67 = arith.constant 0 : index
    %110 = vector.load %arg7[%c0_66, %c0_67] : memref<16x128xbf16, #tpu.memory_space<vmem>>, vector<16x128xbf16>
    %cst_68 = arith.constant dense<0.000000e+00> : vector<64x128xf32>
    %111 = tpu.matmul %105, %110, %cst_68 {dimension_numbers = #tpu.dot_dimension_numbers<[1], [0], [0], [1], [0, 0, 1, 1], [], []>} : vector<64x16xbf16>, vector<16x128xbf16>, vector<64x128xf32> -> vector<64x128xf32>
    %112 = arith.addf %109, %111 : vector<64x128xf32>
    %c0_69 = arith.constant 0 : index
    %c0_70 = arith.constant 0 : index
    %113 = vector.load %arg8[%c0_69, %c0_70] : memref<1x128xf32, #tpu.memory_space<vmem>>, vector<1x128xf32>
    %114 = vector.broadcast %113 : vector<1x128xf32> to vector<64x128xf32>
    %115 = arith.addf %112, %114 : vector<64x128xf32>
    %116 = vector.shape_cast %115 : vector<64x128xf32> to vector<8x8x128xf32>
    %117 = arith.addf %103, %116 : vector<8x8x128xf32>
    %c0_71 = arith.constant 0 : index
    %c0_72 = arith.constant 0 : index
    %c0_73 = arith.constant 0 : index
    %118 = vector.load %arg9[%c0_71, %c0_72, %c0_73] : memref<8x8x128xf32, #tpu.memory_space<vmem>>, vector<8x8x128xf32>
    tpu.vector_store %arg9[%c0_71, %c0_72, %c0_73], %117 {strides = array<i32>} : memref<8x8x128xf32, #tpu.memory_space<vmem>>, vector<8x8x128xf32>,
    return
  }
  func.func @transform_0(%arg0: i32, %arg1: i32) -> (i32, i32, i32) {
    %c0_i32 = arith.constant 0 : i32
    %c0_i32_0 = arith.constant 0 : i32
    return %arg1, %arg0, %c0_i32 : i32, i32, i32
  }
  func.func @transform_1(%arg0: i32, %arg1: i32) -> (i32, i32) {
    %c0_i32 = arith.constant 0 : i32
    %c0_i32_0 = arith.constant 0 : i32
    %c0_i32_1 = arith.constant 0 : i32
    return %c0_i32, %c0_i32_0 : i32, i32
  }
  func.func @transform_2(%arg0: i32, %arg1: i32) -> (i32, i32) {
    %c0_i32 = arith.constant 0 : i32
    %c0_i32_0 = arith.constant 0 : i32
    %c0_i32_1 = arith.constant 0 : i32
    return %c0_i32, %c0_i32_0 : i32, i32
  }
  func.func @transform_3(%arg0: i32, %arg1: i32) -> (i32, i32) {
    %c0_i32 = arith.constant 0 : i32
    %c0_i32_0 = arith.constant 0 : i32
    %c0_i32_1 = arith.constant 0 : i32
    return %c0_i32, %c0_i32_0 : i32, i32
  }
  func.func @transform_4(%arg0: i32, %arg1: i32) -> (i32, i32) {
    %c0_i32 = arith.constant 0 : i32
    %c0_i32_0 = arith.constant 0 : i32
    %c0_i32_1 = arith.constant 0 : i32
    return %c0_i32, %c0_i32_0 : i32, i32
  }
  func.func @transform_5(%arg0: i32, %arg1: i32) -> (i32, i32) {
    %c0_i32 = arith.constant 0 : i32
    %c0_i32_0 = arith.constant 0 : i32
    %c0_i32_1 = arith.constant 0 : i32
    return %c0_i32, %c0_i32_0 : i32, i32
  }
  func.func @transform_6(%arg0: i32, %arg1: i32) -> (i32, i32) {
    %c0_i32 = arith.constant 0 : i32
    %c0_i32_0 = arith.constant 0 : i32
    %c0_i32_1 = arith.constant 0 : i32
    return %c0_i32, %c0_i32_0 : i32, i32
  }
  func.func @transform_7(%arg0: i32, %arg1: i32) -> (i32, i32, i32) {
    %c0_i32 = arith.constant 0 : i32
    %c0_i32_0 = arith.constant 0 : i32
    return %arg1, %arg0, %c0_i32 : i32, i32, i32
  }
}

</mosaic_0001>

<llo_original>
// kernel: rnn_forward.1
$region0: #{rnn_forward.1}
  #allocation0 [shape = 'u32[]', space=smem, size = 0x4, offset = 0x4, fixed_abs, tag = 'smem constant byte address 0x4 - core index']
  #allocation1 [shape = 'u32[72,128]{1,0:T(1,128)}', space=vmem, size = 0x9000, scoped, tag = 'internal scratch']
  #allocation2 [shape = 'f32[8,8,128]{2,1,0:T(8,128)}', space=vmem, size = 0x8000, scoped, tag = 'scratch operand']
  #allocation3 [shape = 'f32[8,128]{1,0:T(8,128)}', space=vmem, size = 0x1000, scoped, tag = 'scratch operand']
  %s0 = inlined_call_operand.vmem [shape: bf16[8,8,16], index: 0, kind: input, shape index: {}]
  %s1 = inlined_call_operand.vmem [shape: bf16[16,128], index: 1, kind: input, shape index: {}]
  %s2 = inlined_call_operand.vmem [shape: f32[1,128], index: 2, kind: input, shape index: {}]
  %s3 = inlined_call_operand.vmem [shape: bf16[128,128], index: 3, kind: input, shape index: {}]
  %s4 = inlined_call_operand.vmem [shape: bf16[128,128], index: 4, kind: input, shape index: {}]
  %s5 = inlined_call_operand.vmem [shape: bf16[16,128], index: 5, kind: input, shape index: {}]
  %s6 = inlined_call_operand.vmem [shape: f32[1,128], index: 6, kind: input, shape index: {}]
  %s7 = inlined_call_operand.vmem [shape: f32[8,8,128], index: 7, kind: output, shape index: {}]
  %s8 = sld [smem:[#allocation0]]
  $region42: #{rnn_forward.1} parent=0
    _
  %s10 = ssub.s32 1, %s8
  %s11 = scalar_select 0, %s10, %s8
  // Predicated region
  $region2: #{rnn_forward.1} parent=0 // pred_check
    _
  $region3: #{rnn_forward.1} parent=0 // pred_check_branch
    %13 = sbr.rel (0) target = $region5
  $region4: #{rnn_forward.1} parent=0 // pred_region
    _
  $region5: #{rnn_forward.1} parent=0 // pred_fallthru
    _
  // Predicated region
  $region6: #{rnn_forward.1} parent=0 // pred_check
    _
  $region7: #{rnn_forward.1} parent=0 // pred_check_branch
    %15 = sbr.rel (0) target = $region9
  $region8: #{rnn_forward.1} parent=0 // pred_region
    _
  $region9: #{rnn_forward.1} parent=0 // pred_fallthru
    _
  // Predicated region
  $region10: #{rnn_forward.1} parent=0 // pred_check
    _
  $region11: #{rnn_forward.1} parent=0 // pred_check_branch
    %17 = sbr.rel (0) target = $region13
  $region12: #{rnn_forward.1} parent=0 // pred_region
    _
  $region13: #{rnn_forward.1} parent=0 // pred_fallthru
    _
  // Predicated region
  $region14: #{rnn_forward.1} parent=0 // pred_check
    _
  $region15: #{rnn_forward.1} parent=0 // pred_check_branch
    %19 = sbr.rel (0) target = $region17
  $region16: #{rnn_forward.1} parent=0 // pred_region
    _
  $region17: #{rnn_forward.1} parent=0 // pred_fallthru
    _
  // Predicated region
  $region18: #{rnn_forward.1} parent=0 // pred_check
    _
  $region19: #{rnn_forward.1} parent=0 // pred_check_branch
    %21 = sbr.rel (0) target = $region21
  $region20: #{rnn_forward.1} parent=0 // pred_region
    _
  $region21: #{rnn_forward.1} parent=0 // pred_fallthru
    _
  // Predicated region
  $region22: #{rnn_forward.1} parent=0 // pred_check
    _
  $region23: #{rnn_forward.1} parent=0 // pred_check_branch
    %23 = sbr.rel (0) target = $region25
  $region24: #{rnn_forward.1} parent=0 // pred_region
    _
  $region25: #{rnn_forward.1} parent=0 // pred_fallthru
    _
  // Predicated region
  $region26: #{rnn_forward.1} parent=0 // pred_check
    _
  $region27: #{rnn_forward.1} parent=0 // pred_check_branch
    %25 = sbr.rel (0) target = $region29
  $region28: #{rnn_forward.1} parent=0 // pred_region
    _
  $region29: #{rnn_forward.1} parent=0 // pred_fallthru
    _
  %p27 = scmp.eq.s32.totalorder 0, 0
  // Predicated region
  $region30: #{rnn_forward.1} parent=0 // pred_check
    %p28 = pneg %p27
  $region31: #{rnn_forward.1} parent=0 // pred_check_branch
    %30 = sbr.rel (%p28) target = $region33
  $region32: #{rnn_forward.1} parent=0 // pred_region
    %31 = vst [vmem:[#allocation3] sm:$0xff] 0.0
  $region33: #{rnn_forward.1} parent=0 // pred_fallthru
    _
  %v32 = vld [vmem:[%s0] sm:$0xf]
  %v33 = vld [vmem:[%s0 + $0x4] sm:$0xf]
  %v34 = vld [vmem:[%s0 + $0x8] sm:$0xf]
  %v35 = vld [vmem:[%s0 + $0xc] sm:$0xf]
  %v36 = vld [vmem:[%s0 + $0x10] sm:$0xf]
  %v37 = vld [vmem:[%s0 + $0x14] sm:$0xf]
  %v38 = vld [vmem:[%s0 + $0x18] sm:$0xf]
  %v39 = vld [vmem:[%s0 + $0x1c] sm:$0xf]
  %v40 = vld [vmem:[%s1] sm:$0xf]
  %v41 = vld [vmem:[%s1 + $0x4] sm:$0xf]
  %v42 = vld [vmem:[%s2] sm:$0x1]
  %v44 = vperm.slane %v42, 0
  %v54 = vunpack.c.l.b16 %v32
  %v55 = vunpack.c.l.b16 %v33
  %v56 = vunpack.c.l.b16 %v34
  %v57 = vunpack.c.l.b16 %v35
  %v58 = vunpack.c.l.b16 %v36
  %v59 = vunpack.c.l.b16 %v37
  %v60 = vunpack.c.l.b16 %v38
  %v61 = vunpack.c.l.b16 %v39
  %v62 = vpack.c.b16 %v55, %v54
  %v63 = vpack.c.b16 %v57, %v56
  %v64 = vpack.c.b16 %v59, %v58
  %v65 = vpack.c.b16 %v61, %v60
  %v68 = vunpack.c.l.b16 %v40
  %v69 = vunpack.c.l.b16 %v41
  %v70 = vpack.c.b16 %v69, %v68
  %vm72 = vcmask 130048
  %v74 = vsel %vm72, %v62, 0
  %v77 = vsel %vm72, %v63, 0
  %v80 = vsel %vm72, %v64, 0
  %v83 = vsel %vm72, %v65, 0
  %85 = vmatpush.bf16.msra.mxu0 0
  %86 = vmatpush.bf16.msra.mxu0 0
  %87 = vmatpush.bf16.msra.mxu0 0
  %88 = vmatpush.bf16.msra.mxu0 0
  %89 = vmatpush.bf16.msra.mxu0 0
  %90 = vmatpush.bf16.msra.mxu0 0
  %91 = vmatpush.bf16.msra.mxu0 0
  %92 = vmatpush.bf16.msra.mxu0 %v70
  %93 = vmatmul.bf16.gmra.mxu0 %v74
  %v94 = vpop.f32.mrf.mxu0
  %v95 = vadd.f32 %v44, %v94
  %v96 = vpop.f32.mrf.mxu0
  %v97 = vadd.f32 %v44, %v96
  %98 = vmatmul.bf16.gmra.mxu0 %v77
  %v99 = vpop.f32.mrf.mxu0
  %v100 = vadd.f32 %v44, %v99
  %v101 = vpop.f32.mrf.mxu0
  %v102 = vadd.f32 %v44, %v101
  %103 = vmatmul.bf16.gmra.mxu0 %v80
  %v104 = vpop.f32.mrf.mxu0
  %v105 = vadd.f32 %v44, %v104
  %v106 = vpop.f32.mrf.mxu0
  %v107 = vadd.f32 %v44, %v106
  %108 = vmatmul.bf16.gmra.mxu0 %v83
  %v109 = vpop.f32.mrf.mxu0
  %v110 = vadd.f32 %v44, %v109
  %v111 = vpop.f32.mrf.mxu0
  %v112 = vadd.f32 %v44, %v111
  %113 = vdwg.mxu0
  %114 = vst [vmem:[#allocation2] sm:$0xff] %v95
  %115 = vst [vmem:[#allocation2 + $0x8] sm:$0xff] %v97
  %116 = vst [vmem:[#allocation2 + $0x10] sm:$0xff] %v100
  %117 = vst [vmem:[#allocation2 + $0x18] sm:$0xff] %v102
  %118 = vst [vmem:[#allocation2 + $0x20] sm:$0xff] %v105
  %119 = vst [vmem:[#allocation2 + $0x28] sm:$0xff] %v107
  %120 = vst [vmem:[#allocation2 + $0x30] sm:$0xff] %v110
  %121 = vst [vmem:[#allocation2 + $0x38] sm:$0xff] %v112
  %v122 = vld [vmem:[%s3] sm:$0xf]
  %v123 = vld [vmem:[%s3 + $0x4] sm:$0xf]
  %v124 = vld [vmem:[%s3 + $0x8] sm:$0xf]
  %v125 = vld [vmem:[%s3 + $0xc] sm:$0xf]
  %v126 = vld [vmem:[%s3 + $0x10] sm:$0xf]
  %v127 = vld [vmem:[%s3 + $0x14] sm:$0xf]
  %v128 = vld [vmem:[%s3 + $0x18] sm:$0xf]
  %v129 = vld [vmem:[%s3 + $0x1c] sm:$0xf]
  %v130 = vld [vmem:[%s3 + $0x20] sm:$0xf]
  %v131 = vld [vmem:[%s3 + $0x24] sm:$0xf]
  %v132 = vld [vmem:[%s3 + $0x28] sm:$0xf]
  %v133 = vld [vmem:[%s3 + $0x2c] sm:$0xf]
  %v134 = vld [vmem:[%s3 + $0x30] sm:$0xf]
  %v135 = vld [vmem:[%s3 + $0x34] sm:$0xf]
  %v136 = vld [vmem:[%s3 + $0x38] sm:$0xf]
  %v137 = vld [vmem:[%s3 + $0x3c] sm:$0xf]
  %v138 = vld [vmem:[#allocation3] sm:$0xff]
  %v139 = vld [vmem:[#allocation2] sm:$0xff]
  %v140 = vpack.c.bf16 %v138, %v138
  %v157 = vunpack.c.l.b16 %v122
  %v158 = vunpack.c.l.b16 %v123
  %v159 = vunpack.c.l.b16 %v124
  %v160 = vunpack.c.l.b16 %v125
  %v161 = vunpack.c.l.b16 %v126
  %v162 = vunpack.c.l.b16 %v127
  %v163 = vunpack.c.l.b16 %v128
  %v164 = vunpack.c.l.b16 %v129
  %v165 = vunpack.c.l.b16 %v130
  %v166 = vunpack.c.l.b16 %v131
  %v167 = vunpack.c.l.b16 %v132
  %v168 = vunpack.c.l.b16 %v133
  %v169 = vunpack.c.l.b16 %v134
  %v170 = vunpack.c.l.b16 %v135
  %v171 = vunpack.c.l.b16 %v136
  %v172 = vunpack.c.l.b16 %v137
  %v173 = vpack.c.b16 %v158, %v157
  %v174 = vpack.c.b16 %v160, %v159
  %v175 = vpack.c.b16 %v162, %v161
  %v176 = vpack.c.b16 %v164, %v163
  %v177 = vpack.c.b16 %v166, %v165
  %v178 = vpack.c.b16 %v168, %v167
  %v179 = vpack.c.b16 %v170, %v169
  %v180 = vpack.c.b16 %v172, %v171
  %189 = vmatpush.bf16.msra.mxu0 %v180
  %190 = vmatpush.bf16.msra.mxu0 %v179
  %191 = vmatpush.bf16.msra.mxu0 %v178
  %192 = vmatpush.bf16.msra.mxu0 %v177
  %193 = vmatpush.bf16.msra.mxu0 %v176
  %194 = vmatpush.bf16.msra.mxu0 %v175
  %195 = vmatpush.bf16.msra.mxu0 %v174
  %196 = vmatpush.bf16.msra.mxu0 %v173
  %197 = vmatmul.bf16.gmra.mxu0 %v140
  %v198 = vpop.f32.mrf.mxu0
  %v199 = vadd.f32 0.0, %v198
  %v200 = vpop.f32.mrf.mxu0
  %201 = vdwg.mxu0
  %v202 = vadd.f32 %v139, %v199
  %v203 = vtanh.pop %v202
  %204 = vst [vmem:[%s7] sm:$0xff] %v203
  %s205 = scalar_lea.vmem [#allocation2], 8
  %v206 = vld [vmem:[%s205] sm:$0xff]
  %v207 = vpack.c.bf16 %v203, %v203
  %208 = vmatpush.bf16.msra.mxu0 %v180
  %209 = vmatpush.bf16.msra.mxu0 %v179
  %210 = vmatpush.bf16.msra.mxu0 %v178
  %211 = vmatpush.bf16.msra.mxu0 %v177
  %212 = vmatpush.bf16.msra.mxu0 %v176
  %213 = vmatpush.bf16.msra.mxu0 %v175
  %214 = vmatpush.bf16.msra.mxu0 %v174
  %215 = vmatpush.bf16.msra.mxu0 %v173
  %216 = vmatmul.bf16.gmra.mxu0 %v207
  %v217 = vpop.f32.mrf.mxu0
  %v218 = vadd.f32 0.0, %v217
  %v219 = vpop.f32.mrf.mxu0
  %220 = vdwg.mxu0
  %v221 = vadd.f32 %v206, %v218
  %v222 = vtanh.pop %v221
  %s223 = scalar_lea.vmem %s7, 8
  %224 = vst [vmem:[%s223] sm:$0xff] %v222
  %s225 = scalar_lea.vmem [#allocation2], 16
  %v226 = vld [vmem:[%s225] sm:$0xff]
  %v227 = vpack.c.bf16 %v222, %v222
  %228 = vmatpush.bf16.msra.mxu0 %v180
  %229 = vmatpush.bf16.msra.mxu0 %v179
  %230 = vmatpush.bf16.msra.mxu0 %v178
  %231 = vmatpush.bf16.msra.mxu0 %v177
  %232 = vmatpush.bf16.msra.mxu0 %v176
  %233 = vmatpush.bf16.msra.mxu0 %v175
  %234 = vmatpush.bf16.msra.mxu0 %v174
  %235 = vmatpush.bf16.msra.mxu0 %v173
  %236 = vmatmul.bf16.gmra.mxu0 %v227
  %v237 = vpop.f32.mrf.mxu0
  %v238 = vadd.f32 0.0, %v237
  %v239 = vpop.f32.mrf.mxu0
  %240 = vdwg.mxu0
  %v241 = vadd.f32 %v226, %v238
  %v242 = vtanh.pop %v241
  %s243 = scalar_lea.vmem %s7, 16
  %244 = vst [vmem:[%s243] sm:$0xff] %v242
  %s245 = scalar_lea.vmem [#allocation2], 24
  %v246 = vld [vmem:[%s245] sm:$0xff]
  %v247 = vpack.c.bf16 %v242, %v242
  %248 = vmatpush.bf16.msra.mxu0 %v180
  %249 = vmatpush.bf16.msra.mxu0 %v179
  %250 = vmatpush.bf16.msra.mxu0 %v178
  %251 = vmatpush.bf16.msra.mxu0 %v177
  %252 = vmatpush.bf16.msra.mxu0 %v176
  %253 = vmatpush.bf16.msra.mxu0 %v175
  %254 = vmatpush.bf16.msra.mxu0 %v174
  %255 = vmatpush.bf16.msra.mxu0 %v173
  %256 = vmatmul.bf16.gmra.mxu0 %v247
  %v257 = vpop.f32.mrf.mxu0
  %v258 = vadd.f32 0.0, %v257
  %v259 = vpop.f32.mrf.mxu0
  %260 = vdwg.mxu0
  %v261 = vadd.f32 %v246, %v258
  %v262 = vtanh.pop %v261
  %s263 = scalar_lea.vmem %s7, 24
  %264 = vst [vmem:[%s263] sm:$0xff] %v262
  %s265 = scalar_lea.vmem [#allocation2], 32
  %v266 = vld [vmem:[%s265] sm:$0xff]
  %v267 = vpack.c.bf16 %v262, %v262
  %268 = vmatpush.bf16.msra.mxu0 %v180
  %269 = vmatpush.bf16.msra.mxu0 %v179
  %270 = vmatpush.bf16.msra.mxu0 %v178
  %271 = vmatpush.bf16.msra.mxu0 %v177
  %272 = vmatpush.bf16.msra.mxu0 %v176
  %273 = vmatpush.bf16.msra.mxu0 %v175
  %274 = vmatpush.bf16.msra.mxu0 %v174
  %275 = vmatpush.bf16.msra.mxu0 %v173
  %276 = vmatmul.bf16.gmra.mxu0 %v267
  %v277 = vpop.f32.mrf.mxu0
  %v278 = vadd.f32 0.0, %v277
  %v279 = vpop.f32.mrf.mxu0
  %280 = vdwg.mxu0
  %v281 = vadd.f32 %v266, %v278
  %v282 = vtanh.pop %v281
  %s283 = scalar_lea.vmem %s7, 32
  %284 = vst [vmem:[%s283] sm:$0xff] %v282
  %s285 = scalar_lea.vmem [#allocation2], 40
  %v286 = vld [vmem:[%s285] sm:$0xff]
  %v287 = vpack.c.bf16 %v282, %v282
  %288 = vmatpush.bf16.msra.mxu0 %v180
  %289 = vmatpush.bf16.msra.mxu0 %v179
  %290 = vmatpush.bf16.msra.mxu0 %v178
  %291 = vmatpush.bf16.msra.mxu0 %v177
  %292 = vmatpush.bf16.msra.mxu0 %v176
  %293 = vmatpush.bf16.msra.mxu0 %v175
  %294 = vmatpush.bf16.msra.mxu0 %v174
  %295 = vmatpush.bf16.msra.mxu0 %v173
  %296 = vmatmul.bf16.gmra.mxu0 %v287
  %v297 = vpop.f32.mrf.mxu0
  %v298 = vadd.f32 0.0, %v297
  %v299 = vpop.f32.mrf.mxu0
  %300 = vdwg.mxu0
  %v301 = vadd.f32 %v286, %v298
  %v302 = vtanh.pop %v301
  %s303 = scalar_lea.vmem %s7, 40
  %304 = vst [vmem:[%s303] sm:$0xff] %v302
  %s305 = scalar_lea.vmem [#allocation2], 48
  %v306 = vld [vmem:[%s305] sm:$0xff]
  %v307 = vpack.c.bf16 %v302, %v302
  %308 = vmatpush.bf16.msra.mxu0 %v180
  %309 = vmatpush.bf16.msra.mxu0 %v179
  %310 = vmatpush.bf16.msra.mxu0 %v178
  %311 = vmatpush.bf16.msra.mxu0 %v177
  %312 = vmatpush.bf16.msra.mxu0 %v176
  %313 = vmatpush.bf16.msra.mxu0 %v175
  %314 = vmatpush.bf16.msra.mxu0 %v174
  %315 = vmatpush.bf16.msra.mxu0 %v173
  %316 = vmatmul.bf16.gmra.mxu0 %v307
  %v317 = vpop.f32.mrf.mxu0
  %v318 = vadd.f32 0.0, %v317
  %v319 = vpop.f32.mrf.mxu0
  %320 = vdwg.mxu0
  %v321 = vadd.f32 %v306, %v318
  %v322 = vtanh.pop %v321
  %s323 = scalar_lea.vmem %s7, 48
  %324 = vst [vmem:[%s323] sm:$0xff] %v322
  %s325 = scalar_lea.vmem [#allocation2], 56
  %v326 = vld [vmem:[%s325] sm:$0xff]
  %v327 = vpack.c.bf16 %v322, %v322
  %328 = vmatpush.bf16.msra.mxu0 %v180
  %329 = vmatpush.bf16.msra.mxu0 %v179
  %330 = vmatpush.bf16.msra.mxu0 %v178
  %331 = vmatpush.bf16.msra.mxu0 %v177
  %332 = vmatpush.bf16.msra.mxu0 %v176
  %333 = vmatpush.bf16.msra.mxu0 %v175
  %334 = vmatpush.bf16.msra.mxu0 %v174
  %335 = vmatpush.bf16.msra.mxu0 %v173
  %336 = vmatmul.bf16.gmra.mxu0 %v327
  %v337 = vpop.f32.mrf.mxu0
  %v338 = vadd.f32 0.0, %v337
  %v339 = vpop.f32.mrf.mxu0
  %340 = vdwg.mxu0
  %v341 = vadd.f32 %v326, %v338
  %v342 = vtanh.pop %v341
  %s343 = scalar_lea.vmem %s7, 56
  %344 = vst [vmem:[%s343] sm:$0xff] %v342
  %345 = vst [vmem:[#allocation3] sm:$0xff] %v342
  %v346 = vld [vmem:[%s7] sm:$0xff]
  %v347 = vld [vmem:[%s7 + $0x8] sm:$0xff]
  %v348 = vld [vmem:[%s7 + $0x10] sm:$0xff]
  %v349 = vld [vmem:[%s7 + $0x18] sm:$0xff]
  %v350 = vld [vmem:[%s7 + $0x20] sm:$0xff]
  %v351 = vld [vmem:[%s7 + $0x28] sm:$0xff]
  %v352 = vld [vmem:[%s7 + $0x30] sm:$0xff]
  %v353 = vld [vmem:[%s7 + $0x38] sm:$0xff]
  %v354 = vld [vmem:[%s0] sm:$0xf]
  %v355 = vld [vmem:[%s0 + $0x4] sm:$0xf]
  %v356 = vld [vmem:[%s0 + $0x8] sm:$0xf]
  %v357 = vld [vmem:[%s0 + $0xc] sm:$0xf]
  %v358 = vld [vmem:[%s0 + $0x10] sm:$0xf]
  %v359 = vld [vmem:[%s0 + $0x14] sm:$0xf]
  %v360 = vld [vmem:[%s0 + $0x18] sm:$0xf]
  %v361 = vld [vmem:[%s0 + $0x1c] sm:$0xf]
  %v362 = vpack.c.bf16 %v347, %v346
  %v363 = vpack.c.bf16 %v349, %v348
  %v364 = vpack.c.bf16 %v351, %v350
  %v365 = vpack.c.bf16 %v353, %v352
  %v366 = vld [vmem:[%s4] sm:$0xf]
  %v367 = vld [vmem:[%s4 + $0x4] sm:$0xf]
  %v368 = vld [vmem:[%s4 + $0x8] sm:$0xf]
  %v369 = vld [vmem:[%s4 + $0xc] sm:$0xf]
  %v370 = vld [vmem:[%s4 + $0x10] sm:$0xf]
  %v371 = vld [vmem:[%s4 + $0x14] sm:$0xf]
  %v372 = vld [vmem:[%s4 + $0x18] sm:$0xf]
  %v373 = vld [vmem:[%s4 + $0x1c] sm:$0xf]
  %v374 = vld [vmem:[%s4 + $0x20] sm:$0xf]
  %v375 = vld [vmem:[%s4 + $0x24] sm:$0xf]
  %v376 = vld [vmem:[%s4 + $0x28] sm:$0xf]
  %v377 = vld [vmem:[%s4 + $0x2c] sm:$0xf]
  %v378 = vld [vmem:[%s4 + $0x30] sm:$0xf]
  %v379 = vld [vmem:[%s4 + $0x34] sm:$0xf]
  %v380 = vld [vmem:[%s4 + $0x38] sm:$0xf]
  %v381 = vld [vmem:[%s4 + $0x3c] sm:$0xf]
  %v382 = vld [vmem:[%s5] sm:$0xf]
  %v383 = vld [vmem:[%s5 + $0x4] sm:$0xf]
  %v392 = vunpack.c.l.b16 %v354
  %v393 = vunpack.c.l.b16 %v355
  %v394 = vunpack.c.l.b16 %v356
  %v395 = vunpack.c.l.b16 %v357
  %v396 = vunpack.c.l.b16 %v358
  %v397 = vunpack.c.l.b16 %v359
  %v398 = vunpack.c.l.b16 %v360
  %v399 = vunpack.c.l.b16 %v361
  %v400 = vpack.c.b16 %v393, %v392
  %v401 = vpack.c.b16 %v395, %v394
  %v402 = vpack.c.b16 %v397, %v396
  %v403 = vpack.c.b16 %v399, %v398
  %v406 = vunpack.c.l.b16 %v382
  %v407 = vunpack.c.l.b16 %v383
  %v408 = vpack.c.b16 %v407, %v406
  %v411 = vsel %vm72, %v400, 0
  %v414 = vsel %vm72, %v401, 0
  %v417 = vsel %vm72, %v402, 0
  %v420 = vsel %vm72, %v403, 0
  %422 = vmatpush.bf16.msra.mxu0 0
  %423 = vmatpush.bf16.msra.mxu0 0
  %424 = vmatpush.bf16.msra.mxu0 0
  %425 = vmatpush.bf16.msra.mxu0 0
  %426 = vmatpush.bf16.msra.mxu0 0
  %427 = vmatpush.bf16.msra.mxu0 0
  %428 = vmatpush.bf16.msra.mxu0 0
  %429 = vmatpush.bf16.msra.mxu0 %v408
  %430 = vmatmul.bf16.gmra.mxu0 %v411
  %v431 = vpop.f32.mrf.mxu0
  %v432 = vadd.f32 0.0, %v431
  %v433 = vpop.f32.mrf.mxu0
  %v434 = vadd.f32 0.0, %v433
  %435 = vmatmul.bf16.gmra.mxu0 %v414
  %v436 = vpop.f32.mrf.mxu0
  %v437 = vadd.f32 0.0, %v436
  %v438 = vpop.f32.mrf.mxu0
  %v439 = vadd.f32 0.0, %v438
  %440 = vmatmul.bf16.gmra.mxu0 %v417
  %v441 = vpop.f32.mrf.mxu0
  %v442 = vadd.f32 0.0, %v441
  %v443 = vpop.f32.mrf.mxu0
  %v444 = vadd.f32 0.0, %v443
  %445 = vmatmul.bf16.gmra.mxu0 %v420
  %v446 = vpop.f32.mrf.mxu0
  %v447 = vadd.f32 0.0, %v446
  %v448 = vpop.f32.mrf.mxu0
  %v449 = vadd.f32 0.0, %v448
  %450 = vdwg.mxu0
  %v467 = vunpack.c.l.b16 %v366
  %v468 = vunpack.c.l.b16 %v367
  %v469 = vunpack.c.l.b16 %v368
  %v470 = vunpack.c.l.b16 %v369
  %v471 = vunpack.c.l.b16 %v370
  %v472 = vunpack.c.l.b16 %v371
  %v473 = vunpack.c.l.b16 %v372
  %v474 = vunpack.c.l.b16 %v373
  %v475 = vunpack.c.l.b16 %v374
  %v476 = vunpack.c.l.b16 %v375
  %v477 = vunpack.c.l.b16 %v376
  %v478 = vunpack.c.l.b16 %v377
  %v479 = vunpack.c.l.b16 %v378
  %v480 = vunpack.c.l.b16 %v379
  %v481 = vunpack.c.l.b16 %v380
  %v482 = vunpack.c.l.b16 %v381
  %v483 = vpack.c.b16 %v468, %v467
  %v484 = vpack.c.b16 %v470, %v469
  %v485 = vpack.c.b16 %v472, %v471
  %v486 = vpack.c.b16 %v474, %v473
  %v487 = vpack.c.b16 %v476, %v475
  %v488 = vpack.c.b16 %v478, %v477
  %v489 = vpack.c.b16 %v480, %v479
  %v490 = vpack.c.b16 %v482, %v481
  %499 = vmatpush.bf16.msra.mxu0 %v490
  %500 = vmatpush.bf16.msra.mxu0 %v489
  %501 = vmatpush.bf16.msra.mxu0 %v488
  %502 = vmatpush.bf16.msra.mxu0 %v487
  %503 = vmatpush.bf16.msra.mxu0 %v486
  %504 = vmatpush.bf16.msra.mxu0 %v485
  %505 = vmatpush.bf16.msra.mxu0 %v484
  %506 = vmatpush.bf16.msra.mxu0 %v483
  %507 = vmatmul.bf16.gmra.mxu0 %v362
  %v508 = vpop.f32.mrf.mxu0
  %v509 = vadd.f32 %v432, %v508
  %v510 = vpop.f32.mrf.mxu0
  %v511 = vadd.f32 %v434, %v510
  %512 = vmatmul.bf16.gmra.mxu0 %v363
  %v513 = vpop.f32.mrf.mxu0
  %v514 = vadd.f32 %v437, %v513
  %v515 = vpop.f32.mrf.mxu0
  %v516 = vadd.f32 %v439, %v515
  %517 = vmatmul.bf16.gmra.mxu0 %v364
  %v518 = vpop.f32.mrf.mxu0
  %v519 = vadd.f32 %v442, %v518
  %v520 = vpop.f32.mrf.mxu0
  %v521 = vadd.f32 %v444, %v520
  %522 = vmatmul.bf16.gmra.mxu0 %v365
  %v523 = vpop.f32.mrf.mxu0
  %v524 = vadd.f32 %v447, %v523
  %v525 = vpop.f32.mrf.mxu0
  %v526 = vadd.f32 %v449, %v525
  %527 = vdwg.mxu0
  %v528 = vld [vmem:[%s6] sm:$0x1]
  %v530 = vperm.slane %v528, 0
  %v532 = vadd.f32 %v509, %v530
  %v533 = vadd.f32 %v511, %v530
  %v534 = vadd.f32 %v514, %v530
  %v535 = vadd.f32 %v516, %v530
  %v536 = vadd.f32 %v519, %v530
  %v537 = vadd.f32 %v521, %v530
  %v538 = vadd.f32 %v524, %v530
  %v539 = vadd.f32 %v526, %v530
  %v540 = vadd.f32 %v346, %v532
  %v541 = vadd.f32 %v347, %v533
  %v542 = vadd.f32 %v348, %v534
  %v543 = vadd.f32 %v349, %v535
  %v544 = vadd.f32 %v350, %v536
  %v545 = vadd.f32 %v351, %v537
  %v546 = vadd.f32 %v352, %v538
  %v547 = vadd.f32 %v353, %v539
  %548 = vst [vmem:[%s7] sm:$0xff] %v540
  %549 = vst [vmem:[%s7 + $0x8] sm:$0xff] %v541
  %550 = vst [vmem:[%s7 + $0x10] sm:$0xff] %v542
  %551 = vst [vmem:[%s7 + $0x18] sm:$0xff] %v543
  %552 = vst [vmem:[%s7 + $0x20] sm:$0xff] %v544
  %553 = vst [vmem:[%s7 + $0x28] sm:$0xff] %v545
  %554 = vst [vmem:[%s7 + $0x30] sm:$0xff] %v546
  %555 = vst [vmem:[%s7 + $0x38] sm:$0xff] %v547
  // Predicated region
  $region34: #{rnn_forward.1} parent=0 // pred_check
    _
  $region35: #{rnn_forward.1} parent=0 // pred_check_branch
    %557 = sbr.rel (0) target = $region37
  $region36: #{rnn_forward.1} parent=0 // pred_region
    _
  $region37: #{rnn_forward.1} parent=0 // pred_fallthru
    _
  // Predicated region
  $region38: #{rnn_forward.1} parent=0 // pred_check
    _
  $region39: #{rnn_forward.1} parent=0 // pred_check_branch
    %559 = sbr.rel (0) target = $region41
  $region40: #{rnn_forward.1} parent=0 // pred_region
    _
  $region41: #{rnn_forward.1} parent=0 // pred_fallthru
    _

</llo_original>
